<compile_context>
chip_gen: v7x
topology: tpu7x:2x2x1
jax: 0.10.0
libtpu: 0.0.40
codegen_flags: <defaults>
</compile_context>

<pallas_src>
import functools

import jax
import jax.numpy as jnp
from jax.experimental import pallas as pl
from jax.experimental.pallas import tpu as pltpu

_LANES = 128
_MAX_BLOCK_ROWS = 2048     # 2048x128 f32 tile = 1 MiB; double-buffered in+out ~4 MiB VMEM
_TARGET_GRID_STEPS = 4     # aim for >= 4 grid steps when there is enough work


def _mlp_kernel(params_ref, x_ref, o_ref, *, hidden, compute_dtype):
    """y = b2 + sum_j w2[j] * relu(w1[j]*x + b1[j]), fully unrolled on the VPU.

    params_ref: (3*hidden + 1,) f32 in SMEM  ->  [w1 | b1 | w2 | b2]
    x_ref / o_ref: (block_rows, 128) lane-dense batch tiles in VMEM.
    """
    x = x_ref[...].astype(compute_dtype)
    # Fold the fc2 bias into the accumulator init (saves one add per element).
    acc = jnp.full(x.shape, params_ref[3 * hidden], dtype=compute_dtype)
    for j in range(hidden):  # hidden = 10, unrolled
        w1j = params_ref[j].astype(compute_dtype)
        b1j = params_ref[hidden + j].astype(compute_dtype)
        w2j = params_ref[2 * hidden + j].astype(compute_dtype)
        h = jnp.maximum(x * w1j + b1j, 0)
        acc = acc + h * w2j
    o_ref[...] = acc.astype(o_ref.dtype)


def _pick_compute_dtype():
    """bf16-packed VALUs exist on v6e / v7x; keep f32 on v5e and older."""
    try:
        kind = jax.devices()[0].device_kind.lower()
    except Exception:
        return jnp.float32
    if any(tag in kind for tag in ("v6", "v7", "7x")):
        return jnp.bfloat16
    return jnp.float32


def _pick_block_rows(rows):
    """Biggest-that-fits block, but keep >= 2-4 grid steps when rows >= 16."""
    if rows <= 8:
        return max(rows, 1)  # single block == full array dim (allowed by Mosaic)
    target = pl.cdiv(rows, _TARGET_GRID_STEPS)
    return min(_MAX_BLOCK_ROWS, max(8, pl.cdiv(target, 8) * 8))


def simple_nn_forward(x, w1, b1, w2, b2, compute_dtype=None):
    """SimpleNN forward  y = fc2(relu(fc1(x))).   x: (B, 1) f32 -> (B, 1) f32.

    Weights stored as (in_features, out_features), i.e. y = x @ W + b.
    """
    if compute_dtype is None:
        compute_dtype = _pick_compute_dtype()
    B = x.shape[0]
    hidden = w1.shape[-1]

    # Single packed scalar table -> one pre-grid SMEM DMA.
    params = jnp.concatenate([
        jnp.asarray(w1, jnp.float32).reshape(hidden),
        jnp.asarray(b1, jnp.float32).reshape(hidden),
        jnp.asarray(w2, jnp.float32).reshape(hidden),
        jnp.asarray(b2, jnp.float32).reshape(1),
    ])

    # Lane-dense layout: (B, 1) -> (rows, 128). Free reshape when B % 128 == 0;
    # otherwise pad only up to the next multiple of 128.
    rows = pl.cdiv(B, _LANES)
    padded = rows * _LANES
    xf = jnp.asarray(x, jnp.float32).reshape(B)
    if padded != B:
        xf = jnp.pad(xf, (0, padded - B))
    x2d = xf.reshape(rows, _LANES)

    block_rows = _pick_block_rows(rows)
    grid = (pl.cdiv(rows, block_rows),)   # partial last block: OOB writes dropped
    block = (block_rows, _LANES)
    idx = lambda i, params_ref: (i, 0)    # prefetch ref arrives positionally

    out2d = pl.pallas_call(
        functools.partial(_mlp_kernel, hidden=hidden, compute_dtype=compute_dtype),
        out_shape=jax.ShapeDtypeStruct((rows, _LANES), jnp.float32),
        grid_spec=pltpu.PrefetchScalarGridSpec(
            num_scalar_prefetch=1,
            grid=grid,
            in_specs=[pl.BlockSpec(block, idx)],
            out_specs=pl.BlockSpec(block, idx),
        ),
        compiler_params=pltpu.CompilerParams(
            dimension_semantics=("parallel",),
        ),
    )(params, x2d)

    out = out2d.reshape(padded)
    if padded != B:
        out = out[:B]
    return out.reshape(B, 1)


def init_params(key):
    """Deterministic init matching nn.Linear's U(-1/sqrt(fan_in), 1/sqrt(fan_in))."""
    k1, k2, k3, k4 = jax.random.split(key, 4)
    bound1 = 1.0 / jnp.sqrt(1.0)   # fc1 fan_in = 1
    bound2 = 1.0 / jnp.sqrt(10.0)  # fc2 fan_in = 10
    # stored as (in_features, out_features)
    w1 = jax.random.uniform(k1, (1, 10), jnp.float32, -bound1, bound1)
    b1 = jax.random.uniform(k2, (10,), jnp.float32, -bound1, bound1)
    w2 = jax.random.uniform(k3, (10, 1), jnp.float32, -bound2, bound2)
    b2 = jax.random.uniform(k4, (1,), jnp.float32, -bound2, bound2)
    return w1, b1, w2, b2


if __name__ == "__main__":
    key = jax.random.PRNGKey(0)
    k_params, k_x1, k_x2 = jax.random.split(key, 3)
    w1, b1, w2, b2 = init_params(k_params)

    compute_dtype = _pick_compute_dtype()
    if compute_dtype == jnp.float32:
        atol, rtol = 1e-5, 1e-5
    else:
        # bf16 VPU path (v6e/v7x): loosened tolerance vs the f32 reference,
        # consistent with the module's reduced-precision ("quantized") intent.
        atol, rtol = 1e-1, 5e-2

    # Case 1: small, non-multiple-of-128 batch (exercises padded lane tail).
    B1 = 300
    x1 = jax.random.normal(k_x1, (B1, 1), jnp.float32)
    out1 = jax.block_until_ready(simple_nn_forward(x1, w1, b1, w2, b2, compute_dtype))
    ref1 = jnp.maximum(x1 @ w1 + b1, 0.0) @ w2 + b2
    assert out1.shape == (B1, 1)
    assert jnp.allclose(out1, ref1, atol=atol, rtol=rtol)

    # Case 2: 128-aligned batch -> zero-copy wrapper + multi-step grid (grid=4).
    B2 = 4096
    x2 = jax.random.normal(k_x2, (B2, 1), jnp.float32)
    out2 = jax.block_until_ready(simple_nn_forward(x2, w1, b1, w2, b2, compute_dtype))
    ref2 = jnp.maximum(x2 @ w1 + b1, 0.0) @ w2 + b2
    assert out2.shape == (B2, 1)
    assert jnp.allclose(out2, ref2, atol=atol, rtol=rtol)

    print("KERNEL_OK")
</pallas_src>

<mosaic_0001>
module attributes {stable_mosaic.version = 11 : i64} {
  func.func @_mlp_kernel(%arg0: i32, %arg1: memref<31xf32, #tpu.memory_space<smem>>, %arg2: memref<3x128xf32, #tpu.memory_space<vmem>>, %arg3: memref<3x128xf32, #tpu.memory_space<vmem>>) attributes {dimension_semantics = [#tpu.dimension_semantics<parallel>], iteration_bounds = array<i64: 1>, scalar_prefetch = 1 : i64, scratch_operands = 0 : i64, tpu.core_type = #tpu.core_type<tc>, window_params = [{transform_indices = @transform_0, window_bounds = array<i64: 3, 128>}, {transform_indices = @transform_1, window_bounds = array<i64: 3, 128>}]} {
    %c0 = arith.constant 0 : index
    %c0_0 = arith.constant 0 : index
    %0 = vector.load %arg2[%c0, %c0_0] : memref<3x128xf32, #tpu.memory_space<vmem>>, vector<3x128xf32>
    %c30 = arith.constant 30 : index
    %1 = memref.load %arg1[%c30] : memref<31xf32, #tpu.memory_space<smem>>
    %2 = vector.broadcast %1 : f32 to vector<3x128xf32>
    %c0_1 = arith.constant 0 : index
    %3 = memref.load %arg1[%c0_1] : memref<31xf32, #tpu.memory_space<smem>>
    %c10 = arith.constant 10 : index
    %4 = memref.load %arg1[%c10] : memref<31xf32, #tpu.memory_space<smem>>
    %c20 = arith.constant 20 : index
    %5 = memref.load %arg1[%c20] : memref<31xf32, #tpu.memory_space<smem>>
    %6 = vector.broadcast %3 : f32 to vector<3x128xf32>
    %7 = arith.mulf %0, %6 : vector<3x128xf32>
    %8 = vector.broadcast %4 : f32 to vector<3x128xf32>
    %9 = arith.addf %7, %8 : vector<3x128xf32>
    %cst = arith.constant 0.000000e+00 : f32
    %10 = vector.broadcast %cst : f32 to vector<3x128xf32>
    %11 = arith.maximumf %9, %10 : vector<3x128xf32>
    %12 = vector.broadcast %5 : f32 to vector<3x128xf32>
    %13 = arith.mulf %11, %12 : vector<3x128xf32>
    %14 = arith.addf %2, %13 : vector<3x128xf32>
    %c1 = arith.constant 1 : index
    %15 = memref.load %arg1[%c1] : memref<31xf32, #tpu.memory_space<smem>>
    %c11 = arith.constant 11 : index
    %16 = memref.load %arg1[%c11] : memref<31xf32, #tpu.memory_space<smem>>
    %c21 = arith.constant 21 : index
    %17 = memref.load %arg1[%c21] : memref<31xf32, #tpu.memory_space<smem>>
    %18 = vector.broadcast %15 : f32 to vector<3x128xf32>
    %19 = arith.mulf %0, %18 : vector<3x128xf32>
    %20 = vector.broadcast %16 : f32 to vector<3x128xf32>
    %21 = arith.addf %19, %20 : vector<3x128xf32>
    %cst_2 = arith.constant 0.000000e+00 : f32
    %22 = vector.broadcast %cst_2 : f32 to vector<3x128xf32>
    %23 = arith.maximumf %21, %22 : vector<3x128xf32>
    %24 = vector.broadcast %17 : f32 to vector<3x128xf32>
    %25 = arith.mulf %23, %24 : vector<3x128xf32>
    %26 = arith.addf %14, %25 : vector<3x128xf32>
    %c2 = arith.constant 2 : index
    %27 = memref.load %arg1[%c2] : memref<31xf32, #tpu.memory_space<smem>>
    %c12 = arith.constant 12 : index
    %28 = memref.load %arg1[%c12] : memref<31xf32, #tpu.memory_space<smem>>
    %c22 = arith.constant 22 : index
    %29 = memref.load %arg1[%c22] : memref<31xf32, #tpu.memory_space<smem>>
    %30 = vector.broadcast %27 : f32 to vector<3x128xf32>
    %31 = arith.mulf %0, %30 : vector<3x128xf32>
    %32 = vector.broadcast %28 : f32 to vector<3x128xf32>
    %33 = arith.addf %31, %32 : vector<3x128xf32>
    %cst_3 = arith.constant 0.000000e+00 : f32
    %34 = vector.broadcast %cst_3 : f32 to vector<3x128xf32>
    %35 = arith.maximumf %33, %34 : vector<3x128xf32>
    %36 = vector.broadcast %29 : f32 to vector<3x128xf32>
    %37 = arith.mulf %35, %36 : vector<3x128xf32>
    %38 = arith.addf %26, %37 : vector<3x128xf32>
    %c3 = arith.constant 3 : index
    %39 = memref.load %arg1[%c3] : memref<31xf32, #tpu.memory_space<smem>>
    %c13 = arith.constant 13 : index
    %40 = memref.load %arg1[%c13] : memref<31xf32, #tpu.memory_space<smem>>
    %c23 = arith.constant 23 : index
    %41 = memref.load %arg1[%c23] : memref<31xf32, #tpu.memory_space<smem>>
    %42 = vector.broadcast %39 : f32 to vector<3x128xf32>
    %43 = arith.mulf %0, %42 : vector<3x128xf32>
    %44 = vector.broadcast %40 : f32 to vector<3x128xf32>
    %45 = arith.addf %43, %44 : vector<3x128xf32>
    %cst_4 = arith.constant 0.000000e+00 : f32
    %46 = vector.broadcast %cst_4 : f32 to vector<3x128xf32>
    %47 = arith.maximumf %45, %46 : vector<3x128xf32>
    %48 = vector.broadcast %41 : f32 to vector<3x128xf32>
    %49 = arith.mulf %47, %48 : vector<3x128xf32>
    %50 = arith.addf %38, %49 : vector<3x128xf32>
    %c4 = arith.constant 4 : index
    %51 = memref.load %arg1[%c4] : memref<31xf32, #tpu.memory_space<smem>>
    %c14 = arith.constant 14 : index
    %52 = memref.load %arg1[%c14] : memref<31xf32, #tpu.memory_space<smem>>
    %c24 = arith.constant 24 : index
    %53 = memref.load %arg1[%c24] : memref<31xf32, #tpu.memory_space<smem>>
    %54 = vector.broadcast %51 : f32 to vector<3x128xf32>
    %55 = arith.mulf %0, %54 : vector<3x128xf32>
    %56 = vector.broadcast %52 : f32 to vector<3x128xf32>
    %57 = arith.addf %55, %56 : vector<3x128xf32>
    %cst_5 = arith.constant 0.000000e+00 : f32
    %58 = vector.broadcast %cst_5 : f32 to vector<3x128xf32>
    %59 = arith.maximumf %57, %58 : vector<3x128xf32>
    %60 = vector.broadcast %53 : f32 to vector<3x128xf32>
    %61 = arith.mulf %59, %60 : vector<3x128xf32>
    %62 = arith.addf %50, %61 : vector<3x128xf32>
    %c5 = arith.constant 5 : index
    %63 = memref.load %arg1[%c5] : memref<31xf32, #tpu.memory_space<smem>>
    %c15 = arith.constant 15 : index
    %64 = memref.load %arg1[%c15] : memref<31xf32, #tpu.memory_space<smem>>
    %c25 = arith.constant 25 : index
    %65 = memref.load %arg1[%c25] : memref<31xf32, #tpu.memory_space<smem>>
    %66 = vector.broadcast %63 : f32 to vector<3x128xf32>
    %67 = arith.mulf %0, %66 : vector<3x128xf32>
    %68 = vector.broadcast %64 : f32 to vector<3x128xf32>
    %69 = arith.addf %67, %68 : vector<3x128xf32>
    %cst_6 = arith.constant 0.000000e+00 : f32
    %70 = vector.broadcast %cst_6 : f32 to vector<3x128xf32>
    %71 = arith.maximumf %69, %70 : vector<3x128xf32>
    %72 = vector.broadcast %65 : f32 to vector<3x128xf32>
    %73 = arith.mulf %71, %72 : vector<3x128xf32>
    %74 = arith.addf %62, %73 : vector<3x128xf32>
    %c6 = arith.constant 6 : index
    %75 = memref.load %arg1[%c6] : memref<31xf32, #tpu.memory_space<smem>>
    %c16 = arith.constant 16 : index
    %76 = memref.load %arg1[%c16] : memref<31xf32, #tpu.memory_space<smem>>
    %c26 = arith.constant 26 : index
    %77 = memref.load %arg1[%c26] : memref<31xf32, #tpu.memory_space<smem>>
    %78 = vector.broadcast %75 : f32 to vector<3x128xf32>
    %79 = arith.mulf %0, %78 : vector<3x128xf32>
    %80 = vector.broadcast %76 : f32 to vector<3x128xf32>
    %81 = arith.addf %79, %80 : vector<3x128xf32>
    %cst_7 = arith.constant 0.000000e+00 : f32
    %82 = vector.broadcast %cst_7 : f32 to vector<3x128xf32>
    %83 = arith.maximumf %81, %82 : vector<3x128xf32>
    %84 = vector.broadcast %77 : f32 to vector<3x128xf32>
    %85 = arith.mulf %83, %84 : vector<3x128xf32>
    %86 = arith.addf %74, %85 : vector<3x128xf32>
    %c7 = arith.constant 7 : index
    %87 = memref.load %arg1[%c7] : memref<31xf32, #tpu.memory_space<smem>>
    %c17 = arith.constant 17 : index
    %88 = memref.load %arg1[%c17] : memref<31xf32, #tpu.memory_space<smem>>
    %c27 = arith.constant 27 : index
    %89 = memref.load %arg1[%c27] : memref<31xf32, #tpu.memory_space<smem>>
    %90 = vector.broadcast %87 : f32 to vector<3x128xf32>
    %91 = arith.mulf %0, %90 : vector<3x128xf32>
    %92 = vector.broadcast %88 : f32 to vector<3x128xf32>
    %93 = arith.addf %91, %92 : vector<3x128xf32>
    %cst_8 = arith.constant 0.000000e+00 : f32
    %94 = vector.broadcast %cst_8 : f32 to vector<3x128xf32>
    %95 = arith.maximumf %93, %94 : vector<3x128xf32>
    %96 = vector.broadcast %89 : f32 to vector<3x128xf32>
    %97 = arith.mulf %95, %96 : vector<3x128xf32>
    %98 = arith.addf %86, %97 : vector<3x128xf32>
    %c8 = arith.constant 8 : index
    %99 = memref.load %arg1[%c8] : memref<31xf32, #tpu.memory_space<smem>>
    %c18 = arith.constant 18 : index
    %100 = memref.load %arg1[%c18] : memref<31xf32, #tpu.memory_space<smem>>
    %c28 = arith.constant 28 : index
    %101 = memref.load %arg1[%c28] : memref<31xf32, #tpu.memory_space<smem>>
    %102 = vector.broadcast %99 : f32 to vector<3x128xf32>
    %103 = arith.mulf %0, %102 : vector<3x128xf32>
    %104 = vector.broadcast %100 : f32 to vector<3x128xf32>
    %105 = arith.addf %103, %104 : vector<3x128xf32>
    %cst_9 = arith.constant 0.000000e+00 : f32
    %106 = vector.broadcast %cst_9 : f32 to vector<3x128xf32>
    %107 = arith.maximumf %105, %106 : vector<3x128xf32>
    %108 = vector.broadcast %101 : f32 to vector<3x128xf32>
    %109 = arith.mulf %107, %108 : vector<3x128xf32>
    %110 = arith.addf %98, %109 : vector<3x128xf32>
    %c9 = arith.constant 9 : index
    %111 = memref.load %arg1[%c9] : memref<31xf32, #tpu.memory_space<smem>>
    %c19 = arith.constant 19 : index
    %112 = memref.load %arg1[%c19] : memref<31xf32, #tpu.memory_space<smem>>
    %c29 = arith.constant 29 : index
    %113 = memref.load %arg1[%c29] : memref<31xf32, #tpu.memory_space<smem>>
    %114 = vector.broadcast %111 : f32 to vector<3x128xf32>
    %115 = arith.mulf %0, %114 : vector<3x128xf32>
    %116 = vector.broadcast %112 : f32 to vector<3x128xf32>
    %117 = arith.addf %115, %116 : vector<3x128xf32>
    %cst_10 = arith.constant 0.000000e+00 : f32
    %118 = vector.broadcast %cst_10 : f32 to vector<3x128xf32>
    %119 = arith.maximumf %117, %118 : vector<3x128xf32>
    %120 = vector.broadcast %113 : f32 to vector<3x128xf32>
    %121 = arith.mulf %119, %120 : vector<3x128xf32>
    %122 = arith.addf %110, %121 : vector<3x128xf32>
    %c0_11 = arith.constant 0 : index
    %c0_12 = arith.constant 0 : index
    %123 = vector.load %arg3[%c0_11, %c0_12] : memref<3x128xf32, #tpu.memory_space<vmem>>, vector<3x128xf32>
    tpu.vector_store %arg3[%c0_11, %c0_12], %122 {strides = array<i32>} : memref<3x128xf32, #tpu.memory_space<vmem>>, vector<3x128xf32>,
    return
  }
  func.func @transform_0(%arg0: i32, %arg1: memref<31xf32, #tpu.memory_space<smem>>) -> (i32, i32) {
    %c0_i32 = arith.constant 0 : i32
    %c0_i32_0 = arith.constant 0 : i32
    return %arg0, %c0_i32 : i32, i32
  }
  func.func @transform_1(%arg0: i32, %arg1: memref<31xf32, #tpu.memory_space<smem>>) -> (i32, i32) {
    %c0_i32 = arith.constant 0 : i32
    %c0_i32_0 = arith.constant 0 : i32
    return %arg0, %c0_i32 : i32, i32
  }
}

</mosaic_0001>

<llo_original>
// kernel: tpu_custom_call.1
$region0: #{tpu_custom_call.1}
  #allocation0 [shape = 'u32[]', space=smem, size = 0x4, offset = 0x4, fixed_abs, tag = 'smem constant byte address 0x4 - core index']
  #allocation1 [shape = 'u32[144,128]{1,0:T(1,128)}', space=vmem, size = 0x12000, scoped, tag = 'internal scratch']
  #allocation2 [shape = 's32[1]{0}', space=sflag, size = 0x4, scoped, tag = 'scoped memory for tpu_custom_call.1']
  #allocation3 [shape = 'u8[512]{0}', space=smem, size = 0x200, scoped, tag = 'prefetched SMEM operand 0']
  %s0 = inlined_call_operand.hbm [shape: f32[31], index: 0, kind: input, shape index: {}]
  %s1 = inlined_call_operand.hbm [shape: f32[3,128], index: 1, kind: input, shape index: {}]
  %s2 = inlined_call_operand.hbm [shape: f32[3,128], index: 2, kind: output, shape index: {}]
  %s3 = sld [smem:[#allocation0]]
  $region18: #{tpu_custom_call.1} parent=0
    _
  %s5 = ssub.s32 1, %s3
  %s6 = scalar_select 0, %s5, %s3
  %8 = dma.hbm_to_smem %s0, 16, [#allocation3], [#allocation2]
  %9 = dma.done [#allocation2], 16
  %10 = sfence
  $region1: #{tpu_custom_call.1} parent=0
    #allocation4 [shape = 'u8[2048]{0}', space=vmem, size = 0x800, scoped, tag = 'input window, operand 1, single buffered']
    #allocation5 [shape = 's32[1]{0}', space=sflag, size = 0x4, scoped, tag = 'scoped memory for tpu_custom_call.1']
    #allocation6 [shape = 's32[1]{0}', space=sflag, size = 0x4, scoped, tag = 'scoped memory for tpu_custom_call.1']
    #allocation7 [shape = 'u8[2048]{0}', space=vmem, size = 0x800, scoped, tag = 'output window, operand 0, single buffered']
    %11 = vsyncpa [#allocation5], 0
    %12 = vsyncpa [#allocation6], 0
    // Predicated region
    $region2: #{tpu_custom_call.1} parent=1 // pred_check
      _
    $region3: #{tpu_custom_call.1} parent=1 // pred_check_branch
      %14 = sbr.rel (0) target = $region5
    $region4: #{tpu_custom_call.1} parent=1 // pred_region
      %s16 = ssub.s32 64, 64
      %17 = vsyncadd [#allocation5], %s16
      %s19 = sshll.u32 [#allocation4], 4
      %s20 = int_to_ptr.vmem [resolvable:$true] %s19
      %22 = dma.hbm_to_vmem [thread:$0]  %s1, 64, %s20, [#allocation5]
    $region5: #{tpu_custom_call.1} parent=1 // pred_fallthru
      _
    // Predicated region
    $region6: #{tpu_custom_call.1} parent=1 // pred_check
      _
    $region7: #{tpu_custom_call.1} parent=1 // pred_check_branch
      %24 = sbr.rel (0) target = $region9
    $region8: #{tpu_custom_call.1} parent=1 // pred_region
      %25 = dma.done [#allocation5], 64
    $region9: #{tpu_custom_call.1} parent=1 // pred_fallthru
      _
    %v26 = vld [vmem:[#allocation4] sm:$0x7]
    %s27 = sld [smem:[#allocation3 + $0x1e]]
    %v28 = vstv %s27
    %s29 = sld [smem:[#allocation3]]
    %s30 = sld [smem:[#allocation3 + $0xa]]
    %s31 = sld [smem:[#allocation3 + $0x14]]
    %v32 = vstv %s29
    %v33 = vmul.f32 %v26, %v32
    %v34 = vstv %s30
    %v35 = vadd.f32 %v33, %v34
    %v36 = vmax.f32 %v35, 0.0
    %v37 = vstv %s31
    %v38 = vmul.f32 %v36, %v37
    %v39 = vadd.f32 %v28, %v38
    %s40 = sld [smem:[#allocation3 + $0x1]]
    %s41 = sld [smem:[#allocation3 + $0xb]]
    %s42 = sld [smem:[#allocation3 + $0x15]]
    %v43 = vstv %s40
    %v44 = vmul.f32 %v26, %v43
    %v45 = vstv %s41
    %v46 = vadd.f32 %v44, %v45
    %v47 = vmax.f32 %v46, 0.0
    %v48 = vstv %s42
    %v49 = vmul.f32 %v47, %v48
    %v50 = vadd.f32 %v39, %v49
    %s51 = sld [smem:[#allocation3 + $0x2]]
    %s52 = sld [smem:[#allocation3 + $0xc]]
    %s53 = sld [smem:[#allocation3 + $0x16]]
    %v54 = vstv %s51
    %v55 = vmul.f32 %v26, %v54
    %v56 = vstv %s52
    %v57 = vadd.f32 %v55, %v56
    %v58 = vmax.f32 %v57, 0.0
    %v59 = vstv %s53
    %v60 = vmul.f32 %v58, %v59
    %v61 = vadd.f32 %v50, %v60
    %s62 = sld [smem:[#allocation3 + $0x3]]
    %s63 = sld [smem:[#allocation3 + $0xd]]
    %s64 = sld [smem:[#allocation3 + $0x17]]
    %v65 = vstv %s62
    %v66 = vmul.f32 %v26, %v65
    %v67 = vstv %s63
    %v68 = vadd.f32 %v66, %v67
    %v69 = vmax.f32 %v68, 0.0
    %v70 = vstv %s64
    %v71 = vmul.f32 %v69, %v70
    %v72 = vadd.f32 %v61, %v71
    %s73 = sld [smem:[#allocation3 + $0x4]]
    %s74 = sld [smem:[#allocation3 + $0xe]]
    %s75 = sld [smem:[#allocation3 + $0x18]]
    %v76 = vstv %s73
    %v77 = vmul.f32 %v26, %v76
    %v78 = vstv %s74
    %v79 = vadd.f32 %v77, %v78
    %v80 = vmax.f32 %v79, 0.0
    %v81 = vstv %s75
    %v82 = vmul.f32 %v80, %v81
    %v83 = vadd.f32 %v72, %v82
    %s84 = sld [smem:[#allocation3 + $0x5]]
    %s85 = sld [smem:[#allocation3 + $0xf]]
    %s86 = sld [smem:[#allocation3 + $0x19]]
    %v87 = vstv %s84
    %v88 = vmul.f32 %v26, %v87
    %v89 = vstv %s85
    %v90 = vadd.f32 %v88, %v89
    %v91 = vmax.f32 %v90, 0.0
    %v92 = vstv %s86
    %v93 = vmul.f32 %v91, %v92
    %v94 = vadd.f32 %v83, %v93
    %s95 = sld [smem:[#allocation3 + $0x6]]
    %s96 = sld [smem:[#allocation3 + $0x10]]
    %s97 = sld [smem:[#allocation3 + $0x1a]]
    %v98 = vstv %s95
    %v99 = vmul.f32 %v26, %v98
    %v100 = vstv %s96
    %v101 = vadd.f32 %v99, %v100
    %v102 = vmax.f32 %v101, 0.0
    %v103 = vstv %s97
    %v104 = vmul.f32 %v102, %v103
    %v105 = vadd.f32 %v94, %v104
    %s106 = sld [smem:[#allocation3 + $0x7]]
    %s107 = sld [smem:[#allocation3 + $0x11]]
    %s108 = sld [smem:[#allocation3 + $0x1b]]
    %v109 = vstv %s106
    %v110 = vmul.f32 %v26, %v109
    %v111 = vstv %s107
    %v112 = vadd.f32 %v110, %v111
    %v113 = vmax.f32 %v112, 0.0
    %v114 = vstv %s108
    %v115 = vmul.f32 %v113, %v114
    %v116 = vadd.f32 %v105, %v115
    %s117 = sld [smem:[#allocation3 + $0x8]]
    %s118 = sld [smem:[#allocation3 + $0x12]]
    %s119 = sld [smem:[#allocation3 + $0x1c]]
    %v120 = vstv %s117
    %v121 = vmul.f32 %v26, %v120
    %v122 = vstv %s118
    %v123 = vadd.f32 %v121, %v122
    %v124 = vmax.f32 %v123, 0.0
    %v125 = vstv %s119
    %v126 = vmul.f32 %v124, %v125
    %v127 = vadd.f32 %v116, %v126
    %s128 = sld [smem:[#allocation3 + $0x9]]
    %s129 = sld [smem:[#allocation3 + $0x13]]
    %s130 = sld [smem:[#allocation3 + $0x1d]]
    %v131 = vstv %s128
    %v132 = vmul.f32 %v26, %v131
    %v133 = vstv %s129
    %v134 = vadd.f32 %v132, %v133
    %v135 = vmax.f32 %v134, 0.0
    %v136 = vstv %s130
    %v137 = vmul.f32 %v135, %v136
    %v138 = vadd.f32 %v127, %v137
    %139 = vst [vmem:[#allocation7] sm:$0x7] %v138
    // Predicated region
    $region10: #{tpu_custom_call.1} parent=1 // pred_check
      _
    $region11: #{tpu_custom_call.1} parent=1 // pred_check_branch
      %141 = sbr.rel (0) target = $region13
    $region12: #{tpu_custom_call.1} parent=1 // pred_region
      %s143 = ssub.s32 64, 64
      %144 = vsyncadd [#allocation6], %s143
      %s146 = sshll.u32 [#allocation7], 4
      %s147 = int_to_ptr.vmem [resolvable:$true] %s146
      %149 = dma.vmem_to_hbm [thread:$0]  %s147, 64, %s2, [#allocation6]
    $region13: #{tpu_custom_call.1} parent=1 // pred_fallthru
      _
    // Predicated region
    $region14: #{tpu_custom_call.1} parent=1 // pred_check
      _
    $region15: #{tpu_custom_call.1} parent=1 // pred_check_branch
      %151 = sbr.rel (0) target = $region17
    $region16: #{tpu_custom_call.1} parent=1 // pred_region
      %152 = dma.done [#allocation6], 64
    $region17: #{tpu_custom_call.1} parent=1 // pred_fallthru
      _
    %153 = vsyncpa [#allocation5], 1
    %154 = vsyncpa [#allocation6], 1

</llo_original>
